<compile_context>
chip_gen: v7x
topology: tpu7x:2x2x1
jax: 0.10.0
libtpu: 0.0.40
codegen_flags: <defaults>
</compile_context>

<pallas_src>
import functools

import jax
import jax.numpy as jnp
import numpy as np
from jax.experimental import pallas as pl
from jax.experimental.pallas import tpu as pltpu


def _dwconv_kernel(x_ref, w_ref, b_ref, m_ref, o_ref, xp_ref, *,
                   W, HW, pad, csub, lane_chunks):
    # x_ref : (Cb, HW)   input channel-tile, spatial flattened on lanes
    # w_ref : (Cb, 9)    depthwise weights, tap index = kh*3 + kw
    # b_ref : (Cb, 1)    bias
    # m_ref : (2, HW)    f32 masks: row0 = (col >= 1), row1 = (col <= W-2)
    # o_ref : (Cb, HW)   output channel-tile
    # xp_ref: (Cb, HW + 2*pad) f32 scratch with zero halos on the lane axis
    Cb = x_ref.shape[0]
    halo = W + 1  # largest |flattened shift| actually referenced

    # Zero only the halo lanes that are read (not the full 128-lane pads).
    # Re-zeroed every step so behaviour is independent of grid order/megacore.
    xp_ref[:, pad - halo:pad] = jnp.zeros((Cb, halo), jnp.float32)
    xp_ref[:, pad + HW:pad + HW + halo] = jnp.zeros((Cb, halo), jnp.float32)
    # Stage the tile once, casting to f32 here (taps then need no cast).
    xp_ref[:, pad:pad + HW] = x_ref[...].astype(jnp.float32)

    n_csub = Cb // csub

    def sub_tile(cs):
        c0 = cs * csub
        if not isinstance(c0, int):
            c0 = pl.multiple_of(c0, csub)
        w = w_ref[pl.ds(c0, csub), :].astype(jnp.float32)    # (csub, 9)
        b = b_ref[pl.ds(c0, csub), :].astype(jnp.float32)    # (csub, 1)

        for (l0, lc) in lane_chunks:
            base = pad + l0

            def tap(dh, dw):
                s = base + dh * W + dw                       # static lane offset
                return xp_ref[pl.ds(c0, csub), s:s + lc]     # (csub, lc) f32

            lm = m_ref[0:1, l0:l0 + lc]                      # kills col == 0
            rm = m_ref[1:2, l0:l0 + lc]                      # kills col == W-1

            # Column-grouped accumulation: mask each edge group once.
            left = (tap(-1, -1) * w[:, 0:1] + tap(0, -1) * w[:, 3:4]
                    + tap(1, -1) * w[:, 6:7])
            center = (b + tap(-1, 0) * w[:, 1:2] + tap(0, 0) * w[:, 4:5]
                      + tap(1, 0) * w[:, 7:8])
            right = (tap(-1, 1) * w[:, 2:3] + tap(0, 1) * w[:, 5:6]
                     + tap(1, 1) * w[:, 8:9])

            res = center + left * lm + right * rm
            o_ref[pl.ds(c0, csub), l0:l0 + lc] = res.astype(o_ref.dtype)

    if n_csub == 1:
        sub_tile(0)
    else:
        def body(cs, carry):
            sub_tile(cs)
            return carry
        jax.lax.fori_loop(0, n_csub, body, 0)


def _pick_cb(C, HW, itemsize, csub):
    """Largest divisor of C that is a multiple of `csub`, <=128, and keeps the
    per-step (Cb, HW) block around ~2 MiB (fits v7x VMEM with double-buffers)."""
    cand = [cb for cb in range(csub, min(C, 128) + 1, csub) if C % cb == 0]
    if not cand:
        return C  # escape hatch: full-channel block (layout-padded)
    budget = 2 * 1024 * 1024
    ok = [cb for cb in cand if cb * HW * itemsize <= budget]
    return max(ok) if ok else min(cand)


def dwconv_pallas(x_nchw, weight, bias):
    """Depthwise 3x3 conv, stride 1, padding 1 (== nn.Conv2d(C, C, 3, 1, 1, groups=C)).

    x_nchw: (N, C, H, W)   weight: (C, 1, 3, 3) (PyTorch layout)   bias: (C,)
    returns (N, C, H, W)
    """
    N, C, H, W = x_nchw.shape
    HW = H * W
    itemsize = jnp.dtype(x_nchw.dtype).itemsize
    csub = 8 if itemsize >= 4 else 16            # sublane granularity
    # Lane-aligned halo, big enough for the largest flattened shift (W + 1),
    # kept a multiple of 128 so the center tap and stores stay lane-aligned.
    pad = ((W + 1 + 127) // 128) * 128
    Cb = _pick_cb(C, HW, itemsize, csub)
    csub_k = csub if (Cb % csub == 0) else Cb

    # Free reshapes only — no transposes, no jnp.pad, no extra HBM passes.
    x = x_nchw.reshape(N, C, HW)
    w = weight.reshape(C, 9)
    b = bias.reshape(C, 1)

    # Column-validity masks (left / right image edge), precomputed on host.
    col = np.arange(HW) % W
    masks = jnp.asarray(
        np.stack([(col >= 1), (col <= W - 2)]).astype(np.float32))      # (2, HW)

    # Static lane chunks (starts are multiples of 512 -> lane-aligned).
    LC = 512
    lane_chunks = []
    l0 = 0
    while l0 < HW:
        lc = min(LC, HW - l0)
        lane_chunks.append((l0, lc))
        l0 += lc
    lane_chunks = tuple(lane_chunks)

    kernel = functools.partial(_dwconv_kernel, W=W, HW=HW, pad=pad,
                               csub=csub_k, lane_chunks=lane_chunks)

    # VMEM estimate: double-buffered in+out blocks + f32 halo scratch + masks.
    blk_bytes = Cb * HW * itemsize
    scratch_bytes = Cb * (HW + 2 * pad) * 4
    est = 4 * blk_bytes + scratch_bytes + 4 * HW * 4 + (1 << 20)
    vmem_limit = int(min(max(2 * est, 32 << 20), 48 << 20))

    out = pl.pallas_call(
        kernel,
        out_shape=jax.ShapeDtypeStruct((N, C, HW), x_nchw.dtype),
        grid_spec=pltpu.PrefetchScalarGridSpec(
            num_scalar_prefetch=0,
            # c outer, n inner -> weight/bias/mask blocks stay resident.
            grid=(C // Cb, N),
            in_specs=[
                pl.BlockSpec((None, Cb, HW), lambda c, n: (n, c, 0)),
                pl.BlockSpec((Cb, 9), lambda c, n: (c, 0)),
                pl.BlockSpec((Cb, 1), lambda c, n: (c, 0)),
                pl.BlockSpec((2, HW), lambda c, n: (0, 0)),
            ],
            out_specs=pl.BlockSpec((None, Cb, HW), lambda c, n: (n, c, 0)),
            scratch_shapes=[pltpu.VMEM((Cb, HW + 2 * pad), jnp.float32)],
        ),
        compiler_params=pltpu.CompilerParams(
            dimension_semantics=("parallel", "parallel"),
            vmem_limit_bytes=vmem_limit,
        ),
    )(x, w, b, masks)

    return out.reshape(N, C, H, W)


def dwconv_reference(x_nchw, weight, bias):
    C = x_nchw.shape[1]
    out = jax.lax.conv_general_dilated(
        x_nchw.astype(jnp.float32),
        weight.astype(jnp.float32),
        window_strides=(1, 1),
        padding=((1, 1), (1, 1)),
        dimension_numbers=("NCHW", "OIHW", "NCHW"),
        feature_group_count=C,
    )
    return out + bias.reshape(1, C, 1, 1)


if __name__ == "__main__":
    key = jax.random.PRNGKey(0)
    k_x, k_w, k_b = jax.random.split(key, 3)

    # Small instance of DWConv(dim=64): 24x24 spatial exercises the
    # multi-lane-chunk path (576 = 512 + 64 remainder) and channel sub-tiling.
    N, C, H, W = 2, 64, 24, 24
    x = jax.random.normal(k_x, (N, C, H, W), dtype=jnp.float32)
    weight = jax.random.normal(k_w, (C, 1, 3, 3), dtype=jnp.float32) * 0.1
    bias = jax.random.normal(k_b, (C,), dtype=jnp.float32) * 0.1

    out = jax.block_until_ready(dwconv_pallas(x, weight, bias))
    ref = dwconv_reference(x, weight, bias)
    assert out.shape == (N, C, H, W)
    assert jnp.allclose(out, ref.astype(out.dtype), atol=1e-5, rtol=1e-5)

    # Odd / tiny shapes: exercises edge masks and the HW < 128 path.
    N2, C2, H2, W2 = 1, 8, 5, 7
    x2 = jax.random.normal(k_x, (N2, C2, H2, W2), dtype=jnp.float32)
    w2 = jax.random.normal(k_w, (C2, 1, 3, 3), dtype=jnp.float32) * 0.1
    b2 = jax.random.normal(k_b, (C2,), dtype=jnp.float32) * 0.1
    out2 = jax.block_until_ready(dwconv_pallas(x2, w2, b2))
    ref2 = dwconv_reference(x2, w2, b2)
    assert jnp.allclose(out2, ref2.astype(out2.dtype), atol=1e-5, rtol=1e-5)

    print("KERNEL_OK")
</pallas_src>

<mosaic_0001>
module attributes {stable_mosaic.version = 11 : i64} {
  func.func @_dwconv_kernel(%arg0: i32, %arg1: i32, %arg2: memref<1x64x576xf32, #tpu.memory_space<vmem>>, %arg3: memref<64x9xf32, #tpu.memory_space<vmem>>, %arg4: memref<64x1xf32, #tpu.memory_space<vmem>>, %arg5: memref<2x576xf32, #tpu.memory_space<vmem>>, %arg6: memref<1x64x576xf32, #tpu.memory_space<vmem>>, %arg7: memref<64x832xf32, #tpu.memory_space<vmem>>) attributes {dimension_semantics = [#tpu.dimension_semantics<parallel>, #tpu.dimension_semantics<parallel>], iteration_bounds = array<i64: 1, 2>, scalar_prefetch = 0 : i64, scratch_operands = 1 : i64, tpu.core_type = #tpu.core_type<tc>, window_params = [{transform_indices = @transform_0, window_bounds = array<i64: 1, 64, 576>}, {transform_indices = @transform_1, window_bounds = array<i64: 64, 9>}, {transform_indices = @transform_2, window_bounds = array<i64: 64, 1>}, {pipeline_mode = #tpu.pipeline_mode<synchronous>, transform_indices = @transform_3, window_bounds = array<i64: 2, 576>}, {transform_indices = @transform_4, window_bounds = array<i64: 1, 64, 576>}]} {
    %cst = arith.constant 0.000000e+00 : f32
    %0 = vector.broadcast %cst : f32 to vector<64x25xf32>
    %c0 = arith.constant 0 : index
    %c103 = arith.constant 103 : index
    %1 = vector.load %arg7[%c0, %c103] : memref<64x832xf32, #tpu.memory_space<vmem>>, vector<64x25xf32>
    tpu.vector_store %arg7[%c0, %c103], %0 {strides = array<i32>} : memref<64x832xf32, #tpu.memory_space<vmem>>, vector<64x25xf32>,
    %cst_0 = arith.constant 0.000000e+00 : f32
    %2 = vector.broadcast %cst_0 : f32 to vector<64x25xf32>
    %c0_1 = arith.constant 0 : index
    %c704 = arith.constant 704 : index
    %3 = vector.load %arg7[%c0_1, %c704] : memref<64x832xf32, #tpu.memory_space<vmem>>, vector<64x25xf32>
    tpu.vector_store %arg7[%c0_1, %c704], %2 {strides = array<i32>} : memref<64x832xf32, #tpu.memory_space<vmem>>, vector<64x25xf32>,
    %c0_2 = arith.constant 0 : index
    %c0_3 = arith.constant 0 : index
    %c0_4 = arith.constant 0 : index
    %4 = vector.load %arg2[%c0_2, %c0_3, %c0_4] : memref<1x64x576xf32, #tpu.memory_space<vmem>>, vector<1x64x576xf32>
    %5 = vector.shape_cast %4 : vector<1x64x576xf32> to vector<64x576xf32>
    %c0_5 = arith.constant 0 : index
    %c128 = arith.constant 128 : index
    %6 = vector.load %arg7[%c0_5, %c128] : memref<64x832xf32, #tpu.memory_space<vmem>>, vector<64x576xf32>
    tpu.vector_store %arg7[%c0_5, %c128], %5 {strides = array<i32>} : memref<64x832xf32, #tpu.memory_space<vmem>>, vector<64x576xf32>,
    %c0_i32 = arith.constant 0 : i32
    %c8_i32 = arith.constant 8 : i32
    %7 = arith.addi %c0_i32, %c8_i32 : i32
    %c1_i32 = arith.constant 1 : i32
    scf.for %arg8 = %c0_i32 to %7 step %c1_i32  : i32 {
      %c8_i32_7 = arith.constant 8 : i32
      %8 = arith.muli %arg8, %c8_i32_7 : i32
      %9 = tpu.assume_multiple %8, 8 : i32
      %10 = arith.index_cast %9 : i32 to index
      %c0_8 = arith.constant 0 : index
      %11 = vector.load %arg3[%10, %c0_8] : memref<64x9xf32, #tpu.memory_space<vmem>>, vector<8x9xf32>
      %12 = arith.index_cast %9 : i32 to index
      %c0_9 = arith.constant 0 : index
      %13 = vector.load %arg4[%12, %c0_9] : memref<64x1xf32, #tpu.memory_space<vmem>>, vector<8x1xf32>
      %c0_10 = arith.constant 0 : index
      %c0_11 = arith.constant 0 : index
      %14 = vector.load %arg5[%c0_10, %c0_11] : memref<2x576xf32, #tpu.memory_space<vmem>>, vector<1x512xf32>
      %c1 = arith.constant 1 : index
      %c0_12 = arith.constant 0 : index
      %15 = vector.load %arg5[%c1, %c0_12] : memref<2x576xf32, #tpu.memory_space<vmem>>, vector<1x512xf32>
      %16 = arith.index_cast %9 : i32 to index
      %c103_13 = arith.constant 103 : index
      %17 = vector.load %arg7[%16, %c103_13] : memref<64x832xf32, #tpu.memory_space<vmem>>, vector<8x512xf32>
      %18 = vector.extract_strided_slice %11 {offsets = [0, 0], sizes = [8, 1], strides = [1, 1]} : vector<8x9xf32> to vector<8x1xf32>
      %19 = vector.broadcast %18 : vector<8x1xf32> to vector<8x512xf32>
      %20 = arith.mulf %17, %19 : vector<8x512xf32>
      %21 = arith.index_cast %9 : i32 to index
      %c127 = arith.constant 127 : index
      %22 = vector.load %arg7[%21, %c127] : memref<64x832xf32, #tpu.memory_space<vmem>>, vector<8x512xf32>
      %23 = vector.extract_strided_slice %11 {offsets = [0, 3], sizes = [8, 1], strides = [1, 1]} : vector<8x9xf32> to vector<8x1xf32>
      %24 = vector.broadcast %23 : vector<8x1xf32> to vector<8x512xf32>
      %25 = arith.mulf %22, %24 : vector<8x512xf32>
      %26 = arith.addf %20, %25 : vector<8x512xf32>
      %27 = arith.index_cast %9 : i32 to index
      %c151 = arith.constant 151 : index
      %28 = vector.load %arg7[%27, %c151] : memref<64x832xf32, #tpu.memory_space<vmem>>, vector<8x512xf32>
      %29 = vector.extract_strided_slice %11 {offsets = [0, 6], sizes = [8, 1], strides = [1, 1]} : vector<8x9xf32> to vector<8x1xf32>
      %30 = vector.broadcast %29 : vector<8x1xf32> to vector<8x512xf32>
      %31 = arith.mulf %28, %30 : vector<8x512xf32>
      %32 = arith.addf %26, %31 : vector<8x512xf32>
      %33 = arith.index_cast %9 : i32 to index
      %c104 = arith.constant 104 : index
      %34 = vector.load %arg7[%33, %c104] : memref<64x832xf32, #tpu.memory_space<vmem>>, vector<8x512xf32>
      %35 = vector.extract_strided_slice %11 {offsets = [0, 1], sizes = [8, 1], strides = [1, 1]} : vector<8x9xf32> to vector<8x1xf32>
      %36 = vector.broadcast %35 : vector<8x1xf32> to vector<8x512xf32>
      %37 = arith.mulf %34, %36 : vector<8x512xf32>
      %38 = vector.broadcast %13 : vector<8x1xf32> to vector<8x512xf32>
      %39 = arith.addf %38, %37 : vector<8x512xf32>
      %40 = arith.index_cast %9 : i32 to index
      %c128_14 = arith.constant 128 : index
      %41 = vector.load %arg7[%40, %c128_14] : memref<64x832xf32, #tpu.memory_space<vmem>>, vector<8x512xf32>
      %42 = vector.extract_strided_slice %11 {offsets = [0, 4], sizes = [8, 1], strides = [1, 1]} : vector<8x9xf32> to vector<8x1xf32>
      %43 = vector.broadcast %42 : vector<8x1xf32> to vector<8x512xf32>
      %44 = arith.mulf %41, %43 : vector<8x512xf32>
      %45 = arith.addf %39, %44 : vector<8x512xf32>
      %46 = arith.index_cast %9 : i32 to index
      %c152 = arith.constant 152 : index
      %47 = vector.load %arg7[%46, %c152] : memref<64x832xf32, #tpu.memory_space<vmem>>, vector<8x512xf32>
      %48 = vector.extract_strided_slice %11 {offsets = [0, 7], sizes = [8, 1], strides = [1, 1]} : vector<8x9xf32> to vector<8x1xf32>
      %49 = vector.broadcast %48 : vector<8x1xf32> to vector<8x512xf32>
      %50 = arith.mulf %47, %49 : vector<8x512xf32>
      %51 = arith.addf %45, %50 : vector<8x512xf32>
      %52 = arith.index_cast %9 : i32 to index
      %c105 = arith.constant 105 : index
      %53 = vector.load %arg7[%52, %c105] : memref<64x832xf32, #tpu.memory_space<vmem>>, vector<8x512xf32>
      %54 = vector.extract_strided_slice %11 {offsets = [0, 2], sizes = [8, 1], strides = [1, 1]} : vector<8x9xf32> to vector<8x1xf32>
      %55 = vector.broadcast %54 : vector<8x1xf32> to vector<8x512xf32>
      %56 = arith.mulf %53, %55 : vector<8x512xf32>
      %57 = arith.index_cast %9 : i32 to index
      %c129 = arith.constant 129 : index
      %58 = vector.load %arg7[%57, %c129] : memref<64x832xf32, #tpu.memory_space<vmem>>, vector<8x512xf32>
      %59 = vector.extract_strided_slice %11 {offsets = [0, 5], sizes = [8, 1], strides = [1, 1]} : vector<8x9xf32> to vector<8x1xf32>
      %60 = vector.broadcast %59 : vector<8x1xf32> to vector<8x512xf32>
      %61 = arith.mulf %58, %60 : vector<8x512xf32>
      %62 = arith.addf %56, %61 : vector<8x512xf32>
      %63 = arith.index_cast %9 : i32 to index
      %c153 = arith.constant 153 : index
      %64 = vector.load %arg7[%63, %c153] : memref<64x832xf32, #tpu.memory_space<vmem>>, vector<8x512xf32>
      %65 = vector.extract_strided_slice %11 {offsets = [0, 8], sizes = [8, 1], strides = [1, 1]} : vector<8x9xf32> to vector<8x1xf32>
      %66 = vector.broadcast %65 : vector<8x1xf32> to vector<8x512xf32>
      %67 = arith.mulf %64, %66 : vector<8x512xf32>
      %68 = arith.addf %62, %67 : vector<8x512xf32>
      %69 = vector.broadcast %14 : vector<1x512xf32> to vector<8x512xf32>
      %70 = arith.mulf %32, %69 : vector<8x512xf32>
      %71 = arith.addf %51, %70 : vector<8x512xf32>
      %72 = vector.broadcast %15 : vector<1x512xf32> to vector<8x512xf32>
      %73 = arith.mulf %68, %72 : vector<8x512xf32>
      %74 = arith.addf %71, %73 : vector<8x512xf32>
      %c0_15 = arith.constant 0 : index
      %75 = arith.index_cast %9 : i32 to index
      %c0_16 = arith.constant 0 : index
      %76 = vector.load %arg6[%c0_15, %75, %c0_16] : memref<1x64x576xf32, #tpu.memory_space<vmem>>, vector<1x8x512xf32>
      %77 = vector.shape_cast %76 : vector<1x8x512xf32> to vector<8x512xf32>
      %78 = vector.shape_cast %74 : vector<8x512xf32> to vector<1x8x512xf32>
      tpu.vector_store %arg6[%c0_15, %75, %c0_16], %78 {strides = array<i32>} : memref<1x64x576xf32, #tpu.memory_space<vmem>>, vector<1x8x512xf32>,
      %c0_17 = arith.constant 0 : index
      %c512 = arith.constant 512 : index
      %79 = vector.load %arg5[%c0_17, %c512] : memref<2x576xf32, #tpu.memory_space<vmem>>, vector<1x64xf32>
      %c1_18 = arith.constant 1 : index
      %c512_19 = arith.constant 512 : index
      %80 = vector.load %arg5[%c1_18, %c512_19] : memref<2x576xf32, #tpu.memory_space<vmem>>, vector<1x64xf32>
      %81 = arith.index_cast %9 : i32 to index
      %c615 = arith.constant 615 : index
      %82 = vector.load %arg7[%81, %c615] : memref<64x832xf32, #tpu.memory_space<vmem>>, vector<8x64xf32>
      %83 = vector.extract_strided_slice %11 {offsets = [0, 0], sizes = [8, 1], strides = [1, 1]} : vector<8x9xf32> to vector<8x1xf32>
      %84 = vector.broadcast %83 : vector<8x1xf32> to vector<8x64xf32>
      %85 = arith.mulf %82, %84 : vector<8x64xf32>
      %86 = arith.index_cast %9 : i32 to index
      %c639 = arith.constant 639 : index
      %87 = vector.load %arg7[%86, %c639] : memref<64x832xf32, #tpu.memory_space<vmem>>, vector<8x64xf32>
      %88 = vector.extract_strided_slice %11 {offsets = [0, 3], sizes = [8, 1], strides = [1, 1]} : vector<8x9xf32> to vector<8x1xf32>
      %89 = vector.broadcast %88 : vector<8x1xf32> to vector<8x64xf32>
      %90 = arith.mulf %87, %89 : vector<8x64xf32>
      %91 = arith.addf %85, %90 : vector<8x64xf32>
      %92 = arith.index_cast %9 : i32 to index
      %c663 = arith.constant 663 : index
      %93 = vector.load %arg7[%92, %c663] : memref<64x832xf32, #tpu.memory_space<vmem>>, vector<8x64xf32>
      %94 = vector.extract_strided_slice %11 {offsets = [0, 6], sizes = [8, 1], strides = [1, 1]} : vector<8x9xf32> to vector<8x1xf32>
      %95 = vector.broadcast %94 : vector<8x1xf32> to vector<8x64xf32>
      %96 = arith.mulf %93, %95 : vector<8x64xf32>
      %97 = arith.addf %91, %96 : vector<8x64xf32>
      %98 = arith.index_cast %9 : i32 to index
      %c616 = arith.constant 616 : index
      %99 = vector.load %arg7[%98, %c616] : memref<64x832xf32, #tpu.memory_space<vmem>>, vector<8x64xf32>
      %100 = vector.extract_strided_slice %11 {offsets = [0, 1], sizes = [8, 1], strides = [1, 1]} : vector<8x9xf32> to vector<8x1xf32>
      %101 = vector.broadcast %100 : vector<8x1xf32> to vector<8x64xf32>
      %102 = arith.mulf %99, %101 : vector<8x64xf32>
      %103 = vector.broadcast %13 : vector<8x1xf32> to vector<8x64xf32>
      %104 = arith.addf %103, %102 : vector<8x64xf32>
      %105 = arith.index_cast %9 : i32 to index
      %c640 = arith.constant 640 : index
      %106 = vector.load %arg7[%105, %c640] : memref<64x832xf32, #tpu.memory_space<vmem>>, vector<8x64xf32>
      %107 = vector.extract_strided_slice %11 {offsets = [0, 4], sizes = [8, 1], strides = [1, 1]} : vector<8x9xf32> to vector<8x1xf32>
      %108 = vector.broadcast %107 : vector<8x1xf32> to vector<8x64xf32>
      %109 = arith.mulf %106, %108 : vector<8x64xf32>
      %110 = arith.addf %104, %109 : vector<8x64xf32>
      %111 = arith.index_cast %9 : i32 to index
      %c664 = arith.constant 664 : index
      %112 = vector.load %arg7[%111, %c664] : memref<64x832xf32, #tpu.memory_space<vmem>>, vector<8x64xf32>
      %113 = vector.extract_strided_slice %11 {offsets = [0, 7], sizes = [8, 1], strides = [1, 1]} : vector<8x9xf32> to vector<8x1xf32>
      %114 = vector.broadcast %113 : vector<8x1xf32> to vector<8x64xf32>
      %115 = arith.mulf %112, %114 : vector<8x64xf32>
      %116 = arith.addf %110, %115 : vector<8x64xf32>
      %117 = arith.index_cast %9 : i32 to index
      %c617 = arith.constant 617 : index
      %118 = vector.load %arg7[%117, %c617] : memref<64x832xf32, #tpu.memory_space<vmem>>, vector<8x64xf32>
      %119 = vector.extract_strided_slice %11 {offsets = [0, 2], sizes = [8, 1], strides = [1, 1]} : vector<8x9xf32> to vector<8x1xf32>
      %120 = vector.broadcast %119 : vector<8x1xf32> to vector<8x64xf32>
      %121 = arith.mulf %118, %120 : vector<8x64xf32>
      %122 = arith.index_cast %9 : i32 to index
      %c641 = arith.constant 641 : index
      %123 = vector.load %arg7[%122, %c641] : memref<64x832xf32, #tpu.memory_space<vmem>>, vector<8x64xf32>
      %124 = vector.extract_strided_slice %11 {offsets = [0, 5], sizes = [8, 1], strides = [1, 1]} : vector<8x9xf32> to vector<8x1xf32>
      %125 = vector.broadcast %124 : vector<8x1xf32> to vector<8x64xf32>
      %126 = arith.mulf %123, %125 : vector<8x64xf32>
      %127 = arith.addf %121, %126 : vector<8x64xf32>
      %128 = arith.index_cast %9 : i32 to index
      %c665 = arith.constant 665 : index
      %129 = vector.load %arg7[%128, %c665] : memref<64x832xf32, #tpu.memory_space<vmem>>, vector<8x64xf32>
      %130 = vector.extract_strided_slice %11 {offsets = [0, 8], sizes = [8, 1], strides = [1, 1]} : vector<8x9xf32> to vector<8x1xf32>
      %131 = vector.broadcast %130 : vector<8x1xf32> to vector<8x64xf32>
      %132 = arith.mulf %129, %131 : vector<8x64xf32>
      %133 = arith.addf %127, %132 : vector<8x64xf32>
      %134 = vector.broadcast %79 : vector<1x64xf32> to vector<8x64xf32>
      %135 = arith.mulf %97, %134 : vector<8x64xf32>
      %136 = arith.addf %116, %135 : vector<8x64xf32>
      %137 = vector.broadcast %80 : vector<1x64xf32> to vector<8x64xf32>
      %138 = arith.mulf %133, %137 : vector<8x64xf32>
      %139 = arith.addf %136, %138 : vector<8x64xf32>
      %c0_20 = arith.constant 0 : index
      %140 = arith.index_cast %9 : i32 to index
      %c512_21 = arith.constant 512 : index
      %141 = vector.load %arg6[%c0_20, %140, %c512_21] : memref<1x64x576xf32, #tpu.memory_space<vmem>>, vector<1x8x64xf32>
      %142 = vector.shape_cast %141 : vector<1x8x64xf32> to vector<8x64xf32>
      %143 = vector.shape_cast %139 : vector<8x64xf32> to vector<1x8x64xf32>
      tpu.vector_store %arg6[%c0_20, %140, %c512_21], %143 {strides = array<i32>} : memref<1x64x576xf32, #tpu.memory_space<vmem>>, vector<1x8x64xf32>,
    }
    %c8_i32_6 = arith.constant 8 : i32
    return
  }
  func.func @transform_0(%arg0: i32, %arg1: i32) -> (i32, i32, i32) {
    %c0_i32 = arith.constant 0 : i32
    %c0_i32_0 = arith.constant 0 : i32
    return %arg1, %arg0, %c0_i32 : i32, i32, i32
  }
  func.func @transform_1(%arg0: i32, %arg1: i32) -> (i32, i32) {
    %c0_i32 = arith.constant 0 : i32
    %c0_i32_0 = arith.constant 0 : i32
    return %arg0, %c0_i32 : i32, i32
  }
  func.func @transform_2(%arg0: i32, %arg1: i32) -> (i32, i32) {
    %c0_i32 = arith.constant 0 : i32
    %c0_i32_0 = arith.constant 0 : i32
    return %arg0, %c0_i32 : i32, i32
  }
  func.func @transform_3(%arg0: i32, %arg1: i32) -> (i32, i32) {
    %c0_i32 = arith.constant 0 : i32
    %c0_i32_0 = arith.constant 0 : i32
    %c0_i32_1 = arith.constant 0 : i32
    return %c0_i32, %c0_i32_0 : i32, i32
  }
  func.func @transform_4(%arg0: i32, %arg1: i32) -> (i32, i32, i32) {
    %c0_i32 = arith.constant 0 : i32
    %c0_i32_0 = arith.constant 0 : i32
    return %arg1, %arg0, %c0_i32 : i32, i32, i32
  }
}

</mosaic_0001>

<llo_original>
// kernel: tpu_custom_call.1
$region0: #{tpu_custom_call.1}
  #allocation0 [shape = 'u32[]', space=smem, size = 0x4, offset = 0x4, fixed_abs, tag = 'smem constant byte address 0x4 - core index']
  #allocation1 [shape = 'u32[144,128]{1,0:T(1,128)}', space=vmem, size = 0x12000, scoped, tag = 'internal scratch']
  #allocation2 [shape = 'f32[64,832]{1,0:T(8,128)}', space=vmem, size = 0x38000, scoped, tag = 'scratch operand']
  %s0 = inlined_call_operand.hbm [shape: f32[2,64,576], index: 0, kind: input, shape index: {}]
  %s1 = inlined_call_operand.vmem [shape: f32[64,9], index: 1, kind: input, shape index: {}]
  %s2 = inlined_call_operand.vmem [shape: f32[64,1], index: 2, kind: input, shape index: {}]
  %s3 = inlined_call_operand.vmem [shape: f32[2,576], index: 3, kind: input, shape index: {}]
  %s4 = inlined_call_operand.hbm [shape: f32[2,64,576], index: 4, kind: output, shape index: {}]
  %s5 = sld [smem:[#allocation0]]
  $region60: #{tpu_custom_call.1} parent=0
    _
  %s7 = ssub.s32 1, %s5
  %s8 = scalar_select 0, %s7, %s5
  $region1: #{tpu_custom_call.1} parent=0
    #allocation3 [shape = 'u8[327680]{0}', space=vmem, size = 0x50000, scoped, tag = 'input window, operand 0']
    #allocation4 [shape = 's32[2]{0}', space=sflag, size = 0x8, scoped, tag = 'scoped memory for tpu_custom_call.1']
    #allocation5 [shape = 's32[2]{0}', space=sflag, size = 0x8, scoped, tag = 'scoped memory for tpu_custom_call.1']
    #allocation6 [shape = 'u8[327680]{0}', space=vmem, size = 0x50000, scoped, tag = 'output window, operand 0']
    %9 = vsyncpa [#allocation4], 0
    %s10 = scalar_lea.sflag [#allocation4], 1
    %11 = vsyncpa %s10, 0
    %12 = vsyncpa [#allocation5], 0
    %s13 = scalar_lea.sflag [#allocation5], 1
    %14 = vsyncpa %s13, 0
    loop: start=0, step=1, limit=4
    $region2: #{tpu_custom_call.1} parent=1 // loop_pre_header
      _
    $region3: #{tpu_custom_call.1} parent=1 // loop_header
      %s16 = sphi 0, %s20
      %p17 = scmp.ge.s32.totalorder %s16, 4
      %s23 = sphi 0, %s35
      %s24 = sphi 0, %s31
      %s25 = sphi 0, %s23
      %s26 = sphi 0, %s24
      %s27 = sphi 0, %s25
      %s28 = sphi 0, %s26
      %s40 = sphi 0, %s42
      %s43 = sphi 0, %s40
      %s44 = sphi 0, %s43
      %s60 = sphi 0, %s44
      %s66 = sphi 0, %s68
      %s69 = sphi 0, %s66
      %s70 = sphi 0, %s69
      %s86 = sphi 0, %s70
      %s92 = sphi 0, %s94
      %s95 = sphi 0, %s92
      %s96 = sphi 0, %s95
      %s112 = sphi 0, %s96
      %s116 = sphi 0, %s116
      %s118 = sphi 0, %s116
      %s119 = sphi 0, %s118
      %s133 = sphi 0, %s119
      %s141 = sphi 0, %s143
      %s144 = sphi 0, %s141
      %s145 = sphi 0, %s144
      %s161 = sphi 0, %s145
    $region4: #{tpu_custom_call.1} parent=1 // loop_header_branch
      %19 = sbr.rel (%p17) target = $region8
    $region5: #{tpu_custom_call.1} parent=1 // loop_body
      %s21 = ssub.s32 %s16, 1
      %s22 = ssub.s32 %s16, 2
      %s29 = sadd.s32 1, %s24
      %p30 = scmp.ge.s32.totalorder %s29, 2
      %s31 = scalar_select %p30, 0, %s29
      %s32 = sadd.s32 1, %s23
      %s33 = scalar_select %p30, %s32, %s23
      %p34 = scmp.ge.s32.totalorder %s33, 1
      %s35 = scalar_select %p34, 0, %s33
      %s36 = ssub.s32 %s24, %s31
      %s37 = ssub.s32 %s23, %s35
      %s38 = sor.u32 %s36, %s37
      %p39 = scmp.eq.s32.totalorder %s38, 0
      %s41 = sadd.s32 %s40, 1
      %s42 = scalar_select %p39, %s40, %s41
      %p45 = pneg %p39
      %p46 = scmp.eq.s32.totalorder %s16, 1
      %p47 = por %p45, %p46
      %p48 = scmp.ne.s32.totalorder %s40, %s43
      %p49 = scmp.eq.s32.totalorder %s16, 0
      %p50 = por %p48, %p49
      %p51 = scmp.ne.s32.totalorder %s40, %s43
      %p52 = scmp.eq.s32.totalorder %s21, 1
      %p53 = por %p51, %p52
      %p54 = scmp.ne.s32.totalorder %s43, %s44
      %p55 = scmp.eq.s32.totalorder %s21, 0
      %p56 = por %p54, %p55
      %p57 = scmp.ne.s32.totalorder %s43, %s44
      %p58 = scmp.eq.s32.totalorder %s22, 1
      %p59 = por %p57, %p58
      %p61 = scmp.ne.s32.totalorder %s44, %s60
      %p62 = scmp.eq.s32.totalorder %s22, 0
      %p63 = por %p61, %p62
      %s64 = ssub.s32 %s23, %s35
      %p65 = scmp.eq.s32.totalorder %s64, 0
      %s67 = sadd.s32 %s66, 1
      %s68 = scalar_select %p65, %s66, %s67
      %p71 = pneg %p65
      %p72 = scmp.eq.s32.totalorder %s16, 1
      %p73 = por %p71, %p72
      %p74 = scmp.ne.s32.totalorder %s66, %s69
      %p75 = scmp.eq.s32.totalorder %s16, 0
      %p76 = por %p74, %p75
      %p77 = scmp.ne.s32.totalorder %s66, %s69
      %p78 = scmp.eq.s32.totalorder %s21, 1
      %p79 = por %p77, %p78
      %p80 = scmp.ne.s32.totalorder %s69, %s70
      %p81 = scmp.eq.s32.totalorder %s21, 0
      %p82 = por %p80, %p81
      %p83 = scmp.ne.s32.totalorder %s69, %s70
      %p84 = scmp.eq.s32.totalorder %s22, 1
      %p85 = por %p83, %p84
      %p87 = scmp.ne.s32.totalorder %s70, %s86
      %p88 = scmp.eq.s32.totalorder %s22, 0
      %p89 = por %p87, %p88
      %s90 = ssub.s32 %s23, %s35
      %p91 = scmp.eq.s32.totalorder %s90, 0
      %s93 = sadd.s32 %s92, 1
      %s94 = scalar_select %p91, %s92, %s93
      %p97 = pneg %p91
      %p98 = scmp.eq.s32.totalorder %s16, 1
      %p99 = por %p97, %p98
      %p100 = scmp.ne.s32.totalorder %s92, %s95
      %p101 = scmp.eq.s32.totalorder %s16, 0
      %p102 = por %p100, %p101
      %p103 = scmp.ne.s32.totalorder %s92, %s95
      %p104 = scmp.eq.s32.totalorder %s21, 1
      %p105 = por %p103, %p104
      %p106 = scmp.ne.s32.totalorder %s95, %s96
      %p107 = scmp.eq.s32.totalorder %s21, 0
      %p108 = por %p106, %p107
      %p109 = scmp.ne.s32.totalorder %s95, %s96
      %p110 = scmp.eq.s32.totalorder %s22, 1
      %p111 = por %p109, %p110
      %p113 = scmp.ne.s32.totalorder %s96, %s112
      %p114 = scmp.eq.s32.totalorder %s22, 0
      %p115 = por %p113, %p114
      %s117 = sadd.s32 %s116, 1
      %p120 = scmp.eq.s32.totalorder %s16, 1
      %p121 = scmp.ne.s32.totalorder %s116, %s118
      %p122 = scmp.eq.s32.totalorder %s16, 0
      %p123 = por %p121, %p122
      %p124 = scmp.ne.s32.totalorder %s116, %s118
      %p125 = scmp.eq.s32.totalorder %s21, 1
      %p126 = por %p124, %p125
      %p127 = scmp.ne.s32.totalorder %s118, %s119
      %p128 = scmp.eq.s32.totalorder %s21, 0
      %p129 = por %p127, %p128
      %p130 = scmp.ne.s32.totalorder %s118, %s119
      %p131 = scmp.eq.s32.totalorder %s22, 1
      %p132 = por %p130, %p131
      %p134 = scmp.ne.s32.totalorder %s119, %s133
      %p135 = scmp.eq.s32.totalorder %s22, 0
      %p136 = por %p134, %p135
      %s137 = ssub.s32 %s24, %s31
      %s138 = ssub.s32 %s23, %s35
      %s139 = sor.u32 %s137, %s138
      %p140 = scmp.eq.s32.totalorder %s139, 0
      %s142 = sadd.s32 %s141, 1
      %s143 = scalar_select %p140, %s141, %s142
      %p146 = pneg %p140
      %p147 = scmp.eq.s32.totalorder %s16, 1
      %p148 = por %p146, %p147
      %p149 = scmp.ne.s32.totalorder %s141, %s144
      %p150 = scmp.eq.s32.totalorder %s16, 0
      %p151 = por %p149, %p150
      %p152 = scmp.ne.s32.totalorder %s141, %s144
      %p153 = scmp.eq.s32.totalorder %s21, 1
      %p154 = por %p152, %p153
      %p155 = scmp.ne.s32.totalorder %s144, %s145
      %p156 = scmp.eq.s32.totalorder %s21, 0
      %p157 = por %p155, %p156
      %p158 = scmp.ne.s32.totalorder %s144, %s145
      %p159 = scmp.eq.s32.totalorder %s22, 1
      %p160 = por %p158, %p159
      %p162 = scmp.ne.s32.totalorder %s145, %s161
      %p163 = scmp.eq.s32.totalorder %s22, 0
      %p164 = por %p162, %p163
      %p165 = scmp.le.s32.totalorder 1, %s16
      %p166 = scmp.lt.s32.totalorder %s16, 3
      %p167 = pnand %p165, %p166
      %p168 = pneg %p167
      // Predicated region
      $region9: #{tpu_custom_call.1} parent=5 // pred_check
        _
      $region10: #{tpu_custom_call.1} parent=5 // pred_check_branch
        %170 = sbr.rel (%p167) target = $region12
      $region11: #{tpu_custom_call.1} parent=5 // pred_region
        %s171 = ssub.s32 %s16, 1
        // Predicated region
        $region13: #{tpu_custom_call.1} parent=11 // pred_check
          %p172 = pneg %p82
        $region14: #{tpu_custom_call.1} parent=11 // pred_check_branch
          %174 = sbr.rel (%p172) target = $region16
        $region15: #{tpu_custom_call.1} parent=11 // pred_region
          %s175 = smul.u32 8, %s25
          %p176 = scmp.lt.s32.totalorder %s175, 7
          %s177 = scalar_select %p176, %s175, 7
          %s178 = smul.addr %s177, 8
          %s179 = scalar_lea.vmem %s1, %s178
          %s180 = smul.u32 8, %s25
        $region16: #{tpu_custom_call.1} parent=11 // pred_fallthru
          _
        // Predicated region
        $region17: #{tpu_custom_call.1} parent=11 // pred_check
          %p181 = pneg %p108
        $region18: #{tpu_custom_call.1} parent=11 // pred_check_branch
          %183 = sbr.rel (%p181) target = $region20
        $region19: #{tpu_custom_call.1} parent=11 // pred_region
          %s184 = smul.u32 8, %s25
          %p185 = scmp.lt.s32.totalorder %s184, 7
          %s186 = scalar_select %p185, %s184, 7
          %s187 = smul.addr %s186, 8
          %s188 = scalar_lea.vmem %s2, %s187
          %s189 = smul.u32 8, %s25
        $region20: #{tpu_custom_call.1} parent=11 // pred_fallthru
          _
        // Predicated region
        $region21: #{tpu_custom_call.1} parent=11 // pred_check
          %p190 = pneg %p129
        $region22: #{tpu_custom_call.1} parent=11 // pred_check_branch
          %192 = sbr.rel (%p190) target = $region24
        $region23: #{tpu_custom_call.1} parent=11 // pred_region
          _
        $region24: #{tpu_custom_call.1} parent=11 // pred_fallthru
          _
      $region12: #{tpu_custom_call.1} parent=5 // pred_fallthru
        _
      %p193 = scmp.lt.s32.totalorder %s16, 2
      // Predicated region
      $region25: #{tpu_custom_call.1} parent=5 // pred_check
        %p194 = pneg %p193
      $region26: #{tpu_custom_call.1} parent=5 // pred_check_branch
        %196 = sbr.rel (%p194) target = $region28
      $region27: #{tpu_custom_call.1} parent=5 // pred_region
        // Predicated region
        $region29: #{tpu_custom_call.1} parent=27 // pred_check
          %p197 = pneg %p50
        $region30: #{tpu_custom_call.1} parent=27 // pred_check_branch
          %199 = sbr.rel (%p197) target = $region32
        $region31: #{tpu_custom_call.1} parent=27 // pred_region
          %s200 = sand.u32 %s40, 1
          %s201 = scalar_lea.sflag [#allocation4], %s200
          %s202 = sand.u32 %s40, 1
          %s203 = smul.addr %s202, 320
          %s204 = scalar_lea.vmem [#allocation3], %s203
          %s205 = smul.u32 8, %s23
          %s207 = ssub.s32 5120, 5120
          %208 = vsyncadd %s201, %s207
          %s209 = smul.addr %s205, 5
          %s210 = smul.addr %s24, 40
          %s211 = sadd.s32 %s209, %s210
          %s212 = smul.addr %s211, 128
          %s213 = scalar_lea.hbm %s0, %s212
          %s214 = sshll.u32 %s204, 4
          %s215 = int_to_ptr.vmem [resolvable:$true] %s214
          %220 = dma.hbm_to_vmem [thread:$0]  %s213, 5120, %s215, %s201, 640, 640, 40
        $region32: #{tpu_custom_call.1} parent=27 // pred_fallthru
          _
      $region28: #{tpu_custom_call.1} parent=5 // pred_fallthru
        _
      %p221 = scmp.le.s32.totalorder 1, %s16
      %p222 = scmp.lt.s32.totalorder %s16, 3
      %p223 = pnand %p221, %p222
      %p224 = pneg %p223
      // Predicated region
      $region33: #{tpu_custom_call.1} parent=5 // pred_check
        _
      $region34: #{tpu_custom_call.1} parent=5 // pred_check_branch
        %226 = sbr.rel (%p223) target = $region36
      $region35: #{tpu_custom_call.1} parent=5 // pred_region
        %s227 = ssub.s32 %s16, 1
        %s228 = sand.u32 %s43, 1
        %s229 = scalar_lea.sflag [#allocation4], %s228
        %s230 = sand.u32 %s43, 1
        %s231 = smul.addr %s230, 320
        %s232 = scalar_lea.vmem [#allocation3], %s231
        // Predicated region
        $region37: #{tpu_custom_call.1} parent=35 // pred_check
          %p233 = pneg %p56
        $region38: #{tpu_custom_call.1} parent=35 // pred_check_branch
          %235 = sbr.rel (%p233) target = $region40
        $region39: #{tpu_custom_call.1} parent=35 // pred_region
          %236 = dma.done %s229, 5120
        $region40: #{tpu_custom_call.1} parent=35 // pred_fallthru
          _
        %s237 = sand.u32 %s43, 1
        %s238 = scalar_lea.sflag [#allocation4], %s237
        %s239 = sand.u32 %s43, 1
        %s240 = smul.addr %s239, 320
        %s241 = scalar_lea.vmem [#allocation3], %s240
        %p242 = pneg %p56
        %p243 = pneg %p53
        %s244 = smul.u32 8, %s25
        %p245 = scmp.lt.s32.totalorder %s244, 7
        %s246 = scalar_select %p245, %s244, 7
        %s247 = smul.addr %s246, 8
        %s248 = scalar_lea.vmem %s1, %s247
        %p249 = pneg %p82
        %p250 = pneg %p79
        %s251 = smul.u32 8, %s25
        %p252 = scmp.lt.s32.totalorder %s251, 7
        %s253 = scalar_select %p252, %s251, 7
        %s254 = smul.addr %s253, 8
        %s255 = scalar_lea.vmem %s2, %s254
        %p256 = pneg %p108
        %p257 = pneg %p105
        %p258 = pneg %p129
        %p259 = pneg %p126
        %p260 = pneg %p157
        %p261 = pneg %p154
        %s262 = sand.u32 %s144, 1
        %s263 = scalar_lea.sflag [#allocation5], %s262
        %s264 = sand.u32 %s144, 1
        %s265 = smul.addr %s264, 320
        %s266 = scalar_lea.vmem [#allocation6], %s265
        %s267 = smul.u32 8, %s25
        %s268 = smul.u32 8, %s25
        %p269 = scmp.lt.s32.totalorder %s268, 7
        %s270 = scalar_select %p269, %s268, 7
        %s271 = smul.addr %s270, 8
        %s272 = scalar_lea.vmem %s1, %s271
        %s273 = smul.u32 8, %s25
        %s274 = smul.u32 8, %s25
        %p275 = scmp.lt.s32.totalorder %s274, 7
        %s276 = scalar_select %p275, %s274, 7
        %s277 = smul.addr %s276, 8
        %s278 = scalar_lea.vmem %s2, %s277
        %s279 = smul.u32 8, %s25
        %s280 = smul.u32 8, %s25
        %vm281 = vcmask 1048376
        %282 = vst.msk [vmem:[#allocation2] sm:$0xff] %vm281, 0.0
        %283 = vst.msk [vmem:[#allocation2 + $0x38] sm:$0xff] %vm281, 0.0
        %284 = vst.msk [vmem:[#allocation2 + $0x70] sm:$0xff] %vm281, 0.0
        %285 = vst.msk [vmem:[#allocation2 + $0xa8] sm:$0xff] %vm281, 0.0
        %286 = vst.msk [vmem:[#allocation2 + $0xe0] sm:$0xff] %vm281, 0.0
        %287 = vst.msk [vmem:[#allocation2 + $0x118] sm:$0xff] %vm281, 0.0
        %288 = vst.msk [vmem:[#allocation2 + $0x150] sm:$0xff] %vm281, 0.0
        %289 = vst.msk [vmem:[#allocation2 + $0x188] sm:$0xff] %vm281, 0.0
        %vm290 = vcmask 728576
        %291 = vst.msk [vmem:[#allocation2 + $0x28] sm:$0xff] %vm290, 0.0
        %292 = vst.msk [vmem:[#allocation2 + $0x60] sm:$0xff] %vm290, 0.0
        %293 = vst.msk [vmem:[#allocation2 + $0x98] sm:$0xff] %vm290, 0.0
        %294 = vst.msk [vmem:[#allocation2 + $0xd0] sm:$0xff] %vm290, 0.0
        %295 = vst.msk [vmem:[#allocation2 + $0x108] sm:$0xff] %vm290, 0.0
        %296 = vst.msk [vmem:[#allocation2 + $0x140] sm:$0xff] %vm290, 0.0
        %297 = vst.msk [vmem:[#allocation2 + $0x178] sm:$0xff] %vm290, 0.0
        %298 = vst.msk [vmem:[#allocation2 + $0x1b0] sm:$0xff] %vm290, 0.0
        %v299 = vld [vmem:[%s232] sm:$0xff]
        %v300 = vld [vmem:[%s232 + $0x8] sm:$0xff]
        %v301 = vld [vmem:[%s232 + $0x10] sm:$0xff]
        %v302 = vld [vmem:[%s232 + $0x18] sm:$0xff]
        %v303 = vld [vmem:[%s232 + $0x20] sm:$0xff]
        %v304 = vld [vmem:[%s232 + $0x28] sm:$0xff]
        %v305 = vld [vmem:[%s232 + $0x30] sm:$0xff]
        %v306 = vld [vmem:[%s232 + $0x38] sm:$0xff]
        %v307 = vld [vmem:[%s232 + $0x40] sm:$0xff]
        %v308 = vld [vmem:[%s232 + $0x48] sm:$0xff]
        %v309 = vld [vmem:[%s232 + $0x50] sm:$0xff]
        %v310 = vld [vmem:[%s232 + $0x58] sm:$0xff]
        %v311 = vld [vmem:[%s232 + $0x60] sm:$0xff]
        %v312 = vld [vmem:[%s232 + $0x68] sm:$0xff]
        %v313 = vld [vmem:[%s232 + $0x70] sm:$0xff]
        %v314 = vld [vmem:[%s232 + $0x78] sm:$0xff]
        %v315 = vld [vmem:[%s232 + $0x80] sm:$0xff]
        %v316 = vld [vmem:[%s232 + $0x88] sm:$0xff]
        %v317 = vld [vmem:[%s232 + $0x90] sm:$0xff]
        %v318 = vld [vmem:[%s232 + $0x98] sm:$0xff]
        %v319 = vld [vmem:[%s232 + $0xa0] sm:$0xff]
        %v320 = vld [vmem:[%s232 + $0xa8] sm:$0xff]
        %v321 = vld [vmem:[%s232 + $0xb0] sm:$0xff]
        %v322 = vld [vmem:[%s232 + $0xb8] sm:$0xff]
        %v323 = vld [vmem:[%s232 + $0xc0] sm:$0xff]
        %v324 = vld [vmem:[%s232 + $0xc8] sm:$0xff]
        %v325 = vld [vmem:[%s232 + $0xd0] sm:$0xff]
        %v326 = vld [vmem:[%s232 + $0xd8] sm:$0xff]
        %v327 = vld [vmem:[%s232 + $0xe0] sm:$0xff]
        %v328 = vld [vmem:[%s232 + $0xe8] sm:$0xff]
        %v329 = vld [vmem:[%s232 + $0xf0] sm:$0xff]
        %v330 = vld [vmem:[%s232 + $0xf8] sm:$0xff]
        %v331 = vld [vmem:[%s232 + $0x100] sm:$0xff]
        %v332 = vld [vmem:[%s232 + $0x108] sm:$0xff]
        %v333 = vld [vmem:[%s232 + $0x110] sm:$0xff]
        %v334 = vld [vmem:[%s232 + $0x118] sm:$0xff]
        %v335 = vld [vmem:[%s232 + $0x120] sm:$0xff]
        %v336 = vld [vmem:[%s232 + $0x128] sm:$0xff]
        %v337 = vld [vmem:[%s232 + $0x130] sm:$0xff]
        %v338 = vld [vmem:[%s232 + $0x138] sm:$0xff]
        %339 = vst [vmem:[#allocation2 + $0x8] sm:$0xff] %v299
        %340 = vst [vmem:[#allocation2 + $0x10] sm:$0xff] %v300
        %341 = vst [vmem:[#allocation2 + $0x18] sm:$0xff] %v301
        %342 = vst [vmem:[#allocation2 + $0x20] sm:$0xff] %v302
        %vm343 = vcmask 523264
        %344 = vst.msk [vmem:[#allocation2 + $0x28] sm:$0xff] %vm343, %v303
        %345 = vst [vmem:[#allocation2 + $0x40] sm:$0xff] %v304
        %346 = vst [vmem:[#allocation2 + $0x48] sm:$0xff] %v305
        %347 = vst [vmem:[#allocation2 + $0x50] sm:$0xff] %v306
        %348 = vst [vmem:[#allocation2 + $0x58] sm:$0xff] %v307
        %349 = vst.msk [vmem:[#allocation2 + $0x60] sm:$0xff] %vm343, %v308
        %350 = vst [vmem:[#allocation2 + $0x78] sm:$0xff] %v309
        %351 = vst [vmem:[#allocation2 + $0x80] sm:$0xff] %v310
        %352 = vst [vmem:[#allocation2 + $0x88] sm:$0xff] %v311
        %353 = vst [vmem:[#allocation2 + $0x90] sm:$0xff] %v312
        %354 = vst.msk [vmem:[#allocation2 + $0x98] sm:$0xff] %vm343, %v313
        %355 = vst [vmem:[#allocation2 + $0xb0] sm:$0xff] %v314
        %356 = vst [vmem:[#allocation2 + $0xb8] sm:$0xff] %v315
        %357 = vst [vmem:[#allocation2 + $0xc0] sm:$0xff] %v316
        %358 = vst [vmem:[#allocation2 + $0xc8] sm:$0xff] %v317
        %359 = vst.msk [vmem:[#allocation2 + $0xd0] sm:$0xff] %vm343, %v318
        %360 = vst [vmem:[#allocation2 + $0xe8] sm:$0xff] %v319
        %361 = vst [vmem:[#allocation2 + $0xf0] sm:$0xff] %v320
        %362 = vst [vmem:[#allocation2 + $0xf8] sm:$0xff] %v321
        %363 = vst [vmem:[#allocation2 + $0x100] sm:$0xff] %v322
        %364 = vst.msk [vmem:[#allocation2 + $0x108] sm:$0xff] %vm343, %v323
        %365 = vst [vmem:[#allocation2 + $0x120] sm:$0xff] %v324
        %366 = vst [vmem:[#allocation2 + $0x128] sm:$0xff] %v325
        %367 = vst [vmem:[#allocation2 + $0x130] sm:$0xff] %v326
        %368 = vst [vmem:[#allocation2 + $0x138] sm:$0xff] %v327
        %369 = vst.msk [vmem:[#allocation2 + $0x140] sm:$0xff] %vm343, %v328
        %370 = vst [vmem:[#allocation2 + $0x158] sm:$0xff] %v329
        %371 = vst [vmem:[#allocation2 + $0x160] sm:$0xff] %v330
        %372 = vst [vmem:[#allocation2 + $0x168] sm:$0xff] %v331
        %373 = vst [vmem:[#allocation2 + $0x170] sm:$0xff] %v332
        %374 = vst.msk [vmem:[#allocation2 + $0x178] sm:$0xff] %vm343, %v333
        %375 = vst [vmem:[#allocation2 + $0x190] sm:$0xff] %v334
        %376 = vst [vmem:[#allocation2 + $0x198] sm:$0xff] %v335
        %377 = vst [vmem:[#allocation2 + $0x1a0] sm:$0xff] %v336
        %378 = vst [vmem:[#allocation2 + $0x1a8] sm:$0xff] %v337
        %379 = vst.msk [vmem:[#allocation2 + $0x1b0] sm:$0xff] %vm343, %v338
        loop: start=0, step=1, limit=8
        $region41: #{tpu_custom_call.1} parent=35 // loop_pre_header
          _
        $region42: #{tpu_custom_call.1} parent=35 // loop_header
          %s381 = sphi 0, %s385
          %p382 = scmp.ge.s32.totalorder %s381, 8
        $region43: #{tpu_custom_call.1} parent=35 // loop_header_branch
          %384 = sbr.rel (%p382) target = $region47
        $region44: #{tpu_custom_call.1} parent=35 // loop_body
          %s386 = smul.u32 %s381, 8
          %s387 = scalar_lea.vmem %s272, %s386
          %v388 = vld [vmem:[%s387] sm:$0xff]
          %s389 = scalar_lea.vmem %s278, %s386
          %v390 = vld [vmem:[%s389] sm:$0xff]
          %v391 = vld [vmem:[%s3] ss:$2 sm:$0xf]
          %s392 = scalar_lea.vmem %s3, 1
          %v393 = vld [vmem:[%s392] ss:$2 sm:$0xf]
          %s394 = sshra.s32 %s386, 3
          %s395 = sand.u32 %s386, 7
          %s396 = smul.u32 %s394, 7
          %s397 = smul.addr %s396, 8
          %s398 = scalar_lea.vmem [#allocation2], %s397
          %v399 = vld [vmem:[%s398] sm:$0xff]
          %v400 = vld [vmem:[%s398 + $0x8] sm:$0xff]
          %v401 = vld [vmem:[%s398 + $0x10] sm:$0xff]
          %v402 = vld [vmem:[%s398 + $0x18] sm:$0xff]
          %v403 = vld [vmem:[%s398 + $0x20] sm:$0xff]
          %405 = vset.pattern.permute.xlu0 0
          %406 = vperm.xlu0 %405, %v388
          %v407 = vpop.permute.xlu0 %406
          %v409 = vmul.f32 %v399, %v407
          %v410 = vmul.f32 %v400, %v407
          %v411 = vmul.f32 %v401, %v407
          %v412 = vmul.f32 %v402, %v407
          %v413 = vmul.f32 %v403, %v407
          %414 = vset.pattern.permute.xlu0 3
          %415 = vperm.xlu0 %414, %v388
          %v416 = vpop.permute.xlu0 %415
          %v418 = vmul.f32 %v399, %v416
          %v419 = vmul.f32 %v400, %v416
          %v420 = vmul.f32 %v401, %v416
          %v421 = vmul.f32 %v402, %v416
          %v422 = vmul.f32 %v403, %v416
          %428 = vrot.lane.b32.xlu0 %v418, 104
          %v429 = vpop.permute.xlu0 %428
          %430 = vrot.lane.b32.xlu0 %v419, 104
          %v431 = vpop.permute.xlu0 %430
          %432 = vrot.lane.b32.xlu0 %v420, 104
          %v433 = vpop.permute.xlu0 %432
          %434 = vrot.lane.b32.xlu0 %v421, 104
          %v435 = vpop.permute.xlu0 %434
          %436 = vrot.lane.b32.xlu0 %v422, 104
          %v437 = vpop.permute.xlu0 %436
          %vm438 = vcmask 850944
          %v439 = vsel %vm438, %v429, %v431
          %v440 = vsel %vm438, %v431, %v433
          %v441 = vsel %vm438, %v433, %v435
          %v442 = vsel %vm438, %v435, %v437
          %v448 = vadd.f32 %v409, %v439
          %v449 = vadd.f32 %v410, %v440
          %v450 = vadd.f32 %v411, %v441
          %v451 = vadd.f32 %v412, %v442
          %v452 = vadd.f32 %v413, %v437
          %v453 = vld [vmem:[%s398 + $0x8] sm:$0xff]
          %v454 = vld [vmem:[%s398 + $0x10] sm:$0xff]
          %v455 = vld [vmem:[%s398 + $0x18] sm:$0xff]
          %v456 = vld [vmem:[%s398 + $0x20] sm:$0xff]
          %v457 = vld [vmem:[%s398 + $0x28] sm:$0xff]
          %458 = vset.pattern.permute.xlu0 6
          %459 = vperm.xlu0 %458, %v388
          %v460 = vpop.permute.xlu0 %459
          %v462 = vmul.f32 %v453, %v460
          %v463 = vmul.f32 %v454, %v460
          %v464 = vmul.f32 %v455, %v460
          %v465 = vmul.f32 %v456, %v460
          %v466 = vmul.f32 %v457, %v460
          %472 = vrot.lane.b32.xlu0 %v462, 80
          %v473 = vpop.permute.xlu0 %472
          %474 = vrot.lane.b32.xlu0 %v463, 80
          %v475 = vpop.permute.xlu0 %474
          %476 = vrot.lane.b32.xlu0 %v464, 80
          %v477 = vpop.permute.xlu0 %476
          %478 = vrot.lane.b32.xlu0 %v465, 80
          %v479 = vpop.permute.xlu0 %478
          %480 = vrot.lane.b32.xlu0 %v466, 80
          %v481 = vpop.permute.xlu0 %480
          %vm482 = vcmask 654336
          %v483 = vsel %vm482, %v473, %v475
          %v484 = vsel %vm482, %v475, %v477
          %v485 = vsel %vm482, %v477, %v479
          %v486 = vsel %vm482, %v479, %v481
          %v492 = vadd.f32 %v448, %v473
          %v493 = vadd.f32 %v449, %v483
          %v494 = vadd.f32 %v450, %v484
          %v495 = vadd.f32 %v451, %v485
          %v496 = vadd.f32 %v452, %v486
          %497 = vset.pattern.permute.xlu0 1
          %498 = vperm.xlu0 %497, %v388
          %v499 = vpop.permute.xlu0 %498
          %v501 = vmul.f32 %v399, %v499
          %v502 = vmul.f32 %v400, %v499
          %v503 = vmul.f32 %v401, %v499
          %v504 = vmul.f32 %v402, %v499
          %v505 = vmul.f32 %v403, %v499
          %507 = vset.pattern.permute.xlu0 0
          %508 = vperm.xlu0 %507, %v390
          %v509 = vpop.permute.xlu0 %508
          %v511 = vadd.f32 %v509, %v501
          %v512 = vadd.f32 %v509, %v502
          %v513 = vadd.f32 %v509, %v503
          %v514 = vadd.f32 %v509, %v504
          %v515 = vadd.f32 %v509, %v505
          %516 = vset.pattern.permute.xlu0 4
          %517 = vperm.xlu0 %516, %v388
          %v518 = vpop.permute.xlu0 %517
          %v520 = vmul.f32 %v400, %v518
          %v521 = vmul.f32 %v401, %v518
          %v522 = vmul.f32 %v402, %v518
          %v523 = vmul.f32 %v403, %v518
          %528 = vrot.lane.b32.xlu0 %v520, 104
          %v529 = vpop.permute.xlu0 %528
          %530 = vrot.lane.b32.xlu0 %v521, 104
          %v531 = vpop.permute.xlu0 %530
          %532 = vrot.lane.b32.xlu0 %v522, 104
          %v533 = vpop.permute.xlu0 %532
          %534 = vrot.lane.b32.xlu0 %v523, 104
          %v535 = vpop.permute.xlu0 %534
          %v536 = vsel %vm438, %v529, %v531
          %v537 = vsel %vm438, %v531, %v533
          %v538 = vsel %vm438, %v533, %v535
          %v544 = vadd.f32 %v511, %v529
          %v545 = vadd.f32 %v512, %v536
          %v546 = vadd.f32 %v513, %v537
          %v547 = vadd.f32 %v514, %v538
          %v548 = vadd.f32 %v515, %v535
          %549 = vset.pattern.permute.xlu0 7
          %550 = vperm.xlu0 %549, %v388
          %v551 = vpop.permute.xlu0 %550
          %v553 = vmul.f32 %v453, %v551
          %v554 = vmul.f32 %v454, %v551
          %v555 = vmul.f32 %v455, %v551
          %v556 = vmul.f32 %v456, %v551
          %v557 = vmul.f32 %v457, %v551
          %563 = vrot.lane.b32.xlu0 %v553, 80
          %v564 = vpop.permute.xlu0 %563
          %565 = vrot.lane.b32.xlu0 %v554, 80
          %v566 = vpop.permute.xlu0 %565
          %567 = vrot.lane.b32.xlu0 %v555, 80
          %v568 = vpop.permute.xlu0 %567
          %569 = vrot.lane.b32.xlu0 %v556, 80
          %v570 = vpop.permute.xlu0 %569
          %571 = vrot.lane.b32.xlu0 %v557, 80
          %v572 = vpop.permute.xlu0 %571
          %v573 = vsel %vm482, %v564, %v566
          %v574 = vsel %vm482, %v566, %v568
          %v575 = vsel %vm482, %v568, %v570
          %v576 = vsel %vm482, %v570, %v572
          %v582 = vadd.f32 %v544, %v564
          %v583 = vadd.f32 %v545, %v573
          %v584 = vadd.f32 %v546, %v574
          %v585 = vadd.f32 %v547, %v575
          %v586 = vadd.f32 %v548, %v576
          %587 = vset.pattern.permute.xlu0 2
          %588 = vperm.xlu0 %587, %v388
          %v589 = vpop.permute.xlu0 %588
          %v591 = vmul.f32 %v399, %v589
          %v592 = vmul.f32 %v400, %v589
          %v593 = vmul.f32 %v401, %v589
          %v594 = vmul.f32 %v402, %v589
          %v595 = vmul.f32 %v403, %v589
          %596 = vset.pattern.permute.xlu0 5
          %597 = vperm.xlu0 %596, %v388
          %v598 = vpop.permute.xlu0 %597
          %v600 = vmul.f32 %v453, %v598
          %v601 = vmul.f32 %v454, %v598
          %v602 = vmul.f32 %v455, %v598
          %v603 = vmul.f32 %v456, %v598
          %v604 = vmul.f32 %v457, %v598
          %610 = vrot.lane.b32.xlu0 %v600, 104
          %v611 = vpop.permute.xlu0 %610
          %612 = vrot.lane.b32.xlu0 %v601, 104
          %v613 = vpop.permute.xlu0 %612
          %614 = vrot.lane.b32.xlu0 %v602, 104
          %v615 = vpop.permute.xlu0 %614
          %616 = vrot.lane.b32.xlu0 %v603, 104
          %v617 = vpop.permute.xlu0 %616
          %618 = vrot.lane.b32.xlu0 %v604, 104
          %v619 = vpop.permute.xlu0 %618
          %v620 = vsel %vm438, %v611, %v613
          %v621 = vsel %vm438, %v613, %v615
          %v622 = vsel %vm438, %v615, %v617
          %v623 = vsel %vm438, %v617, %v619
          %v629 = vadd.f32 %v591, %v611
          %v630 = vadd.f32 %v592, %v620
          %v631 = vadd.f32 %v593, %v621
          %v632 = vadd.f32 %v594, %v622
          %v633 = vadd.f32 %v595, %v623
          %634 = vset.pattern.permute.xlu0 8
          %635 = vperm.xlu0 %634, %v388
          %v636 = vpop.permute.xlu0 %635
          %v638 = vmul.f32 %v453, %v636
          %v639 = vmul.f32 %v454, %v636
          %v640 = vmul.f32 %v455, %v636
          %v641 = vmul.f32 %v456, %v636
          %v642 = vmul.f32 %v457, %v636
          %648 = vrot.lane.b32.xlu0 %v638, 80
          %v649 = vpop.permute.xlu0 %648
          %650 = vrot.lane.b32.xlu0 %v639, 80
          %v651 = vpop.permute.xlu0 %650
          %652 = vrot.lane.b32.xlu0 %v640, 80
          %v653 = vpop.permute.xlu0 %652
          %654 = vrot.lane.b32.xlu0 %v641, 80
          %v655 = vpop.permute.xlu0 %654
          %656 = vrot.lane.b32.xlu0 %v642, 80
          %v657 = vpop.permute.xlu0 %656
          %v658 = vsel %vm482, %v649, %v651
          %v659 = vsel %vm482, %v651, %v653
          %v660 = vsel %vm482, %v653, %v655
          %v661 = vsel %vm482, %v655, %v657
          %v667 = vadd.f32 %v629, %v649
          %v668 = vadd.f32 %v630, %v658
          %v669 = vadd.f32 %v631, %v659
          %v670 = vadd.f32 %v632, %v660
          %v671 = vadd.f32 %v633, %v661
          %v673 = vlaneseq
          %v674 = vshrl.u32 %v673, 7
          %v675 = vsub.s32 0, %v674
          %v676 = vrot.slane %v391, %v675
          %v677 = vlaneseq
          %v678 = vshrl.u32 %v677, 7
          %v679 = vsub.s32 1, %v678
          %v680 = vrot.slane %v391, %v679
          %v681 = vlaneseq
          %v682 = vshrl.u32 %v681, 7
          %v683 = vsub.s32 2, %v682
          %v684 = vrot.slane %v391, %v683
          %v685 = vlaneseq
          %v686 = vshrl.u32 %v685, 7
          %v687 = vsub.s32 3, %v686
          %v688 = vrot.slane %v391, %v687
          %689 = vrot.lane.b32.xlu0 %v676, 103
          %v690 = vpop.permute.xlu0 %689
          %691 = vrot.lane.b32.xlu0 %v680, 103
          %v692 = vpop.permute.xlu0 %691
          %693 = vrot.lane.b32.xlu0 %v684, 103
          %v694 = vpop.permute.xlu0 %693
          %695 = vrot.lane.b32.xlu0 %v688, 103
          %v696 = vpop.permute.xlu0 %695
          %vm697 = vcmask 842752
          %v698 = vsel %vm697, %v690, %v692
          %v699 = vsel %vm697, %v692, %v694
          %v700 = vsel %vm697, %v694, %v696
          %v706 = vmul.f32 %v492, %v690
          %v707 = vmul.f32 %v493, %v698
          %v708 = vmul.f32 %v494, %v699
          %v709 = vmul.f32 %v495, %v700
          %v710 = vmul.f32 %v496, %v696
          %716 = vrot.lane.b32.xlu0 %v706, 1
          %v717 = vpop.permute.xlu0 %716
          %718 = vrot.lane.b32.xlu0 %v707, 1
          %v719 = vpop.permute.xlu0 %718
          %720 = vrot.lane.b32.xlu0 %v708, 1
          %v721 = vpop.permute.xlu0 %720
          %722 = vrot.lane.b32.xlu0 %v709, 1
          %v723 = vpop.permute.xlu0 %722
          %724 = vrot.lane.b32.xlu0 %v710, 1
          %v725 = vpop.permute.xlu0 %724
          %vm726 = vcmask 7168
          %v727 = vsel %vm726, %v717, %v719
          %v728 = vsel %vm726, %v719, %v721
          %v729 = vsel %vm726, %v721, %v723
          %v730 = vsel %vm726, %v723, %v725
          %v736 = vadd.f32 %v582, %v717
          %v737 = vadd.f32 %v583, %v727
          %v738 = vadd.f32 %v584, %v728
          %v739 = vadd.f32 %v585, %v729
          %v740 = vadd.f32 %v586, %v730
          %v742 = vlaneseq
          %v743 = vshrl.u32 %v742, 7
          %v744 = vsub.s32 0, %v743
          %v745 = vrot.slane %v393, %v744
          %v746 = vlaneseq
          %v747 = vshrl.u32 %v746, 7
          %v748 = vsub.s32 1, %v747
          %v749 = vrot.slane %v393, %v748
          %v750 = vlaneseq
          %v751 = vshrl.u32 %v750, 7
          %v752 = vsub.s32 2, %v751
          %v753 = vrot.slane %v393, %v752
          %v754 = vlaneseq
          %v755 = vshrl.u32 %v754, 7
          %v756 = vsub.s32 3, %v755
          %v757 = vrot.slane %v393, %v756
          %758 = vrot.lane.b32.xlu0 %v745, 105
          %v759 = vpop.permute.xlu0 %758
          %760 = vrot.lane.b32.xlu0 %v749, 105
          %v761 = vpop.permute.xlu0 %760
          %762 = vrot.lane.b32.xlu0 %v753, 105
          %v763 = vpop.permute.xlu0 %762
          %764 = vrot.lane.b32.xlu0 %v757, 105
          %v765 = vpop.permute.xlu0 %764
          %vm766 = vcmask 859136
          %v767 = vsel %vm766, %v759, %v761
          %v768 = vsel %vm766, %v761, %v763
          %v769 = vsel %vm766, %v763, %v765
          %v775 = vmul.f32 %v667, %v759
          %v776 = vmul.f32 %v668, %v767
          %v777 = vmul.f32 %v669, %v768
          %v778 = vmul.f32 %v670, %v769
          %v779 = vmul.f32 %v671, %v765
          %785 = vrot.lane.b32.xlu0 %v775, 127
          %v786 = vpop.permute.xlu0 %785
          %787 = vrot.lane.b32.xlu0 %v776, 127
          %v788 = vpop.permute.xlu0 %787
          %789 = vrot.lane.b32.xlu0 %v777, 127
          %v790 = vpop.permute.xlu0 %789
          %791 = vrot.lane.b32.xlu0 %v778, 127
          %v792 = vpop.permute.xlu0 %791
          %793 = vrot.lane.b32.xlu0 %v779, 127
          %v794 = vpop.permute.xlu0 %793
          %vm795 = vcmask 1039360
          %v796 = vsel %vm795, %v786, %v788
          %v797 = vsel %vm795, %v788, %v790
          %v798 = vsel %vm795, %v790, %v792
          %v799 = vsel %vm795, %v792, %v794
          %v805 = vadd.f32 %v736, %v796
          %v806 = vadd.f32 %v737, %v797
          %v807 = vadd.f32 %v738, %v798
          %v808 = vadd.f32 %v739, %v799
          %v809 = vadd.f32 %v740, %v794
          %815 = vrot.lane.b32.xlu0 %v805, 24
          %v816 = vpop.permute.xlu0 %815
          %817 = vrot.lane.b32.xlu0 %v806, 24
          %v818 = vpop.permute.xlu0 %817
          %819 = vrot.lane.b32.xlu0 %v807, 24
          %v820 = vpop.permute.xlu0 %819
          %821 = vrot.lane.b32.xlu0 %v808, 24
          %v822 = vpop.permute.xlu0 %821
          %823 = vrot.lane.b32.xlu0 %v809, 24
          %v824 = vpop.permute.xlu0 %823
          %vm825 = vcmask 195584
          %v826 = vsel %vm825, %v816, %v818
          %v827 = vsel %vm825, %v818, %v820
          %v828 = vsel %vm825, %v820, %v822
          %v829 = vsel %vm825, %v822, %v824
          %s834 = smul.u32 %s394, 5
          %s835 = smul.addr %s834, 8
          %s836 = scalar_lea.vmem %s266, %s835 [#allocation6]
          %837 = vst [vmem:[%s836] sm:$0xff] %v826
          %838 = vst [vmem:[%s836 + $0x8] sm:$0xff] %v827
          %839 = vst [vmem:[%s836 + $0x10] sm:$0xff] %v828
          %840 = vst [vmem:[%s836 + $0x18] sm:$0xff] %v829
          %v841 = vld [vmem:[%s3 + $0x8] sm:$0x1]
          %v842 = vld [vmem:[%s3 + $0x9] sm:$0x1]
          %v843 = vld [vmem:[%s398 + $0x20] sm:$0xff]
          %v844 = vld [vmem:[%s398 + $0x28] sm:$0xff]
          %v845 = vmul.f32 %v843, %v407
          %v846 = vmul.f32 %v844, %v407
          %v847 = vmul.f32 %v843, %v416
          %v848 = vmul.f32 %v844, %v416
          %851 = vrot.lane.b32.xlu0 %v847, 104
          %v852 = vpop.permute.xlu0 %851
          %853 = vrot.lane.b32.xlu0 %v848, 104
          %v854 = vpop.permute.xlu0 %853
          %v855 = vsel %vm438, %v852, %v854
          %v858 = vadd.f32 %v845, %v855
          %v859 = vadd.f32 %v846, %v854
          %v860 = vmul.f32 %v844, %v460
          %862 = vrot.lane.b32.xlu0 %v860, 80
          %v863 = vpop.permute.xlu0 %862
          %v865 = vadd.f32 %v858, %v863
          %v866 = vadd.f32 %v859, %v863
          %v867 = vmul.f32 %v843, %v499
          %v868 = vmul.f32 %v844, %v499
          %v869 = vadd.f32 %v509, %v867
          %v870 = vadd.f32 %v509, %v868
          %v871 = vmul.f32 %v844, %v518
          %873 = vrot.lane.b32.xlu0 %v871, 104
          %v874 = vpop.permute.xlu0 %873
          %v876 = vadd.f32 %v869, %v874
          %v877 = vadd.f32 %v870, %v874
          %v878 = vmul.f32 %v844, %v551
          %880 = vrot.lane.b32.xlu0 %v878, 80
          %v881 = vpop.permute.xlu0 %880
          %v883 = vadd.f32 %v876, %v881
          %v884 = vadd.f32 %v877, %v881
          %v885 = vmul.f32 %v843, %v589
          %v886 = vmul.f32 %v844, %v589
          %v887 = vmul.f32 %v844, %v598
          %889 = vrot.lane.b32.xlu0 %v887, 104
          %v890 = vpop.permute.xlu0 %889
          %v892 = vadd.f32 %v885, %v890
          %v893 = vadd.f32 %v886, %v890
          %v894 = vmul.f32 %v844, %v636
          %896 = vrot.lane.b32.xlu0 %v894, 80
          %v897 = vpop.permute.xlu0 %896
          %v899 = vadd.f32 %v892, %v897
          %v900 = vadd.f32 %v893, %v897
          %v901 = vlaneseq
          %v902 = vshrl.u32 %v901, 7
          %v903 = vsub.s32 0, %v902
          %v904 = vrot.slane %v841, %v903
          %906 = vrot.lane.b32.xlu0 %v904, 103
          %v907 = vpop.permute.xlu0 %906
          %v909 = vmul.f32 %v865, %v907
          %v910 = vmul.f32 %v866, %v907
          %913 = vrot.lane.b32.xlu0 %v909, 1
          %v914 = vpop.permute.xlu0 %913
          %915 = vrot.lane.b32.xlu0 %v910, 1
          %v916 = vpop.permute.xlu0 %915
          %v917 = vsel %vm726, %v914, %v916
          %v920 = vadd.f32 %v883, %v914
          %v921 = vadd.f32 %v884, %v917
          %v922 = vlaneseq
          %v923 = vshrl.u32 %v922, 7
          %v924 = vsub.s32 0, %v923
          %v925 = vrot.slane %v842, %v924
          %927 = vrot.lane.b32.xlu0 %v925, 105
          %v928 = vpop.permute.xlu0 %927
          %v930 = vmul.f32 %v899, %v928
          %v931 = vmul.f32 %v900, %v928
          %934 = vrot.lane.b32.xlu0 %v930, 127
          %v935 = vpop.permute.xlu0 %934
          %936 = vrot.lane.b32.xlu0 %v931, 127
          %v937 = vpop.permute.xlu0 %936
          %v938 = vsel %vm795, %v935, %v937
          %v941 = vadd.f32 %v920, %v938
          %v942 = vadd.f32 %v921, %v937
          %945 = vrot.lane.b32.xlu0 %v941, 24
          %v946 = vpop.permute.xlu0 %945
          %947 = vrot.lane.b32.xlu0 %v942, 24
          %v948 = vpop.permute.xlu0 %947
          %v949 = vsel %vm825, %v946, %v948
          %951 = vst.msk [vmem:[%s836 + $0x20] sm:$0xff] %vm343, %v949
        $region45: #{tpu_custom_call.1} parent=35 // loop_footer
          %s385 = sadd.s32 1, %s381
        $region46: #{tpu_custom_call.1} parent=35 // loop_footer_branch
          %380 = sbr.rel target = $region42
        $region47: #{tpu_custom_call.1} parent=35 // loop_exit
          _
        %s952 = sand.u32 %s144, 1
        %s953 = scalar_lea.sflag [#allocation5], %s952
        %s954 = sand.u32 %s144, 1
        %s955 = smul.addr %s954, 320
        %s956 = scalar_lea.vmem [#allocation6], %s955
        // Predicated region
        $region48: #{tpu_custom_call.1} parent=35 // pred_check
          %p957 = pneg %p154
        $region49: #{tpu_custom_call.1} parent=35 // pred_check_branch
          %959 = sbr.rel (%p957) target = $region51
        $region50: #{tpu_custom_call.1} parent=35 // pred_region
          %s960 = smul.u32 8, %s25
          %s962 = ssub.s32 5120, 5120
          %963 = vsyncadd %s953, %s962
          %s964 = smul.addr %s960, 5
          %s965 = smul.addr %s26, 40
          %s966 = sadd.s32 %s964, %s965
          %s967 = smul.addr %s966, 128
          %s968 = scalar_lea.hbm %s4, %s967
          %s969 = sshll.u32 %s956, 4
          %s970 = int_to_ptr.vmem [resolvable:$true] %s969
          %975 = dma.vmem_to_hbm [thread:$0]  %s970, 5120, %s968, %s953, 640, 640, 40
        $region51: #{tpu_custom_call.1} parent=35 // pred_fallthru
          _
      $region36: #{tpu_custom_call.1} parent=5 // pred_fallthru
        _
      %p976 = scmp.le.s32.totalorder 2, %s16
      // Predicated region
      $region52: #{tpu_custom_call.1} parent=5 // pred_check
        %p977 = pneg %p976
      $region53: #{tpu_custom_call.1} parent=5 // pred_check_branch
        %979 = sbr.rel (%p977) target = $region55
      $region54: #{tpu_custom_call.1} parent=5 // pred_region
        %s980 = ssub.s32 %s16, 2
        // Predicated region
        $region56: #{tpu_custom_call.1} parent=54 // pred_check
          %p981 = pneg %p160
        $region57: #{tpu_custom_call.1} parent=54 // pred_check_branch
          %983 = sbr.rel (%p981) target = $region59
        $region58: #{tpu_custom_call.1} parent=54 // pred_region
          %s984 = sand.u32 %s145, 1
          %s985 = scalar_lea.sflag [#allocation5], %s984
          %s986 = sand.u32 %s145, 1
          %s987 = smul.addr %s986, 320
          %s988 = scalar_lea.vmem [#allocation6], %s987
          %989 = dma.done %s985, 5120
        $region59: #{tpu_custom_call.1} parent=54 // pred_fallthru
          _
      $region55: #{tpu_custom_call.1} parent=5 // pred_fallthru
        _
    $region6: #{tpu_custom_call.1} parent=1 // loop_footer
      %s20 = sadd.s32 1, %s16
    $region7: #{tpu_custom_call.1} parent=1 // loop_footer_branch
      %15 = sbr.rel target = $region3
    $region8: #{tpu_custom_call.1} parent=1 // loop_exit
      _
    %990 = vsyncpa [#allocation4], 1
    %s991 = scalar_lea.sflag [#allocation4], 1
    %992 = vsyncpa %s991, 1
    %993 = vsyncpa [#allocation5], 1
    %s994 = scalar_lea.sflag [#allocation5], 1
    %995 = vsyncpa %s994, 1

</llo_original>
